<compile_context>
chip_gen: v5e
topology: v5e:2x2
jax: 0.10.0
libtpu: 0.0.40
codegen_flags: <defaults>
</compile_context>

<pallas_src>
from typing import NamedTuple

import jax
import jax.numpy as jnp
import numpy as np
from jax.experimental import pallas as pl
from jax.experimental.pallas import tpu as pltpu


# ---------------------------------------------------------------------------
# Small helpers
# ---------------------------------------------------------------------------
def _nbytes(shape, dtype):
    return int(np.prod(shape)) * np.dtype(dtype).itemsize


def _vmem_limit(estimate_bytes):
    # Scoped-VMEM default is only 16/32 MiB (v5e / v6e,v7x); size the limit to
    # the actual footprint with headroom, capped at physical VMEM.
    return int(min(128 * 1024 * 1024, max(32 * 1024 * 1024, 2 * estimate_bytes)))


def _largest_divisor(n, upper):
    for d in range(min(n, upper), 0, -1):
        if n % d == 0:
            return d
    return 1


# ---------------------------------------------------------------------------
# Parameter preparation: transpose / row-split / cast ONCE, outside any
# per-step call path.
# ---------------------------------------------------------------------------
class MinimalRNNParams(NamedTuple):
    w_h: jax.Array   # (D, 2D)  rows of W^T multiplying h (compute dtype, bf16)
    w_s: jax.Array   # (D, 2D)  rows of W^T multiplying s (compute dtype, bf16)
    b: jax.Array     # (1, 2D)  bias, f32


def prepare_params(weight, bias, compute_dtype=jnp.bfloat16):
    """weight: (2D, 2D) torch nn.Linear layout (out, in).  bias: (2D,).

    For very long sequences where bf16 drift of the recurrent matmul is a
    concern, pass compute_dtype=jnp.float32 (keeps everything else identical).
    """
    two_d = weight.shape[0]
    d = two_d // 2
    w_t = weight.T.astype(compute_dtype)            # (2D_in, 2D_out)
    return MinimalRNNParams(
        w_h=w_t[:d, :],                              # rows multiplying h -> (D, 2D)
        w_s=w_t[d:, :],                              # rows multiplying s -> (D, 2D)
        b=bias.astype(jnp.float32).reshape(1, two_d),
    )


# ---------------------------------------------------------------------------
# Single-step kernel (matches MinimalRNNCell.forward(h, s)).
# ---------------------------------------------------------------------------
def minimal_rnn_cell_kernel(h_ref, s_ref, wh_ref, ws_ref, b_ref, out_ref):
    h = h_ref[...].astype(jnp.float32)
    cdt = wh_ref.dtype
    d = h.shape[-1]
    # u[:, :D] = gate pre-activation, u[:, D:] = candidate pre-activation.
    # Two K=D matmuls (no per-step [h, s] concatenate / relayout).
    u = (jnp.dot(h.astype(cdt), wh_ref[...], preferred_element_type=jnp.float32)
         + jnp.dot(s_ref[...].astype(cdt), ws_ref[...],
                   preferred_element_type=jnp.float32)
         + b_ref[...])
    gate = jax.nn.sigmoid(u[:, :d])
    c = u[:, d:]
    cand = c * jax.nn.sigmoid(c)                     # siglu
    # h*gate + (1-gate)*cand, rewritten with one fewer VPU multiply.
    out_ref[...] = (cand + gate * (h - cand)).astype(out_ref.dtype)


def minimal_rnn_cell(h, s, params, *, donate_h=False):
    """One MinimalRNNCell.forward(h, s) step.  h, s: (B, D).

    Prefer minimal_rnn_cell_seq for recurrent use: this path re-streams both
    (D, 2D) weights from HBM on every call.  donate_h=True aliases the output
    onto h (in-place carry update when the caller donates h).
    """
    w_h, w_s, b = params
    B, D = h.shape
    est = (_nbytes((B, D), h.dtype) + _nbytes((B, D), s.dtype)
           + _nbytes(w_h.shape, w_h.dtype) + _nbytes(w_s.shape, w_s.dtype)
           + _nbytes(b.shape, b.dtype) + _nbytes((B, D), h.dtype))
    return pl.pallas_call(
        minimal_rnn_cell_kernel,
        out_shape=jax.ShapeDtypeStruct((B, D), h.dtype),
        grid_spec=pltpu.PrefetchScalarGridSpec(
            num_scalar_prefetch=0,
            grid=(1,),
            in_specs=[
                pl.BlockSpec((B, D), lambda i: (0, 0)),          # h
                pl.BlockSpec((B, D), lambda i: (0, 0)),          # s
                pl.BlockSpec((D, 2 * D), lambda i: (0, 0)),      # w_h (bf16)
                pl.BlockSpec((D, 2 * D), lambda i: (0, 0)),      # w_s (bf16)
                pl.BlockSpec((1, 2 * D), lambda i: (0, 0)),      # bias (f32)
            ],
            out_specs=pl.BlockSpec((B, D), lambda i: (0, 0)),
        ),
        input_output_aliases={0: 0} if donate_h else {},
        compiler_params=pltpu.CompilerParams(
            dimension_semantics=("arbitrary",),
            vmem_limit_bytes=_vmem_limit(2 * est)),
    )(h, s, w_h, w_s, b)


# ---------------------------------------------------------------------------
# Hoisted input projection: s_proj[t] = s_t @ w_s + b for ALL timesteps, as a
# big data-parallel matmul (M = block_t * B) outside the sequential loop.
# ---------------------------------------------------------------------------
def _input_projection_kernel(s_ref, ws_ref, b_ref, out_ref):
    tb, bsz, d = s_ref.shape
    two_d = ws_ref.shape[-1]
    x = s_ref[...].reshape(tb * bsz, d).astype(ws_ref.dtype)
    u = jnp.dot(x, ws_ref[...], preferred_element_type=jnp.float32) + b_ref[...]
    out_ref[...] = u.reshape(tb, bsz, two_d).astype(out_ref.dtype)


def precompute_input_projection(s_seq, w_s, b, block_t, proj_dtype=jnp.bfloat16):
    """Returns s_proj: (T, B, 2D) in proj_dtype (bf16 by default to halve the
    bytes streamed into the recurrent kernel).  Bias is folded here, ONCE."""
    T, B, D = s_seq.shape
    two_d = w_s.shape[-1]
    est = (_nbytes((block_t, B, D), s_seq.dtype)
           + _nbytes(w_s.shape, w_s.dtype) + _nbytes(b.shape, b.dtype)
           + _nbytes((block_t, B, two_d), proj_dtype))
    return pl.pallas_call(
        _input_projection_kernel,
        out_shape=jax.ShapeDtypeStruct((T, B, two_d), proj_dtype),
        grid_spec=pltpu.PrefetchScalarGridSpec(
            num_scalar_prefetch=0,
            grid=(T // block_t,),
            in_specs=[
                pl.BlockSpec((block_t, B, D), lambda t: (t, 0, 0)),   # s (streamed)
                pl.BlockSpec((D, two_d), lambda t: (0, 0)),           # w_s (resident)
                pl.BlockSpec((1, two_d), lambda t: (0, 0)),           # bias (resident)
            ],
            out_specs=pl.BlockSpec((block_t, B, two_d), lambda t: (t, 0, 0)),
        ),
        compiler_params=pltpu.CompilerParams(
            dimension_semantics=("parallel",),      # time blocks are independent
            vmem_limit_bytes=_vmem_limit(2 * est)),
    )(s_seq, w_s, b)


# ---------------------------------------------------------------------------
# Sequence kernel: time blocks as a sequential grid axis, w_h VMEM-resident,
# block_t steps per grid iteration via an unrolled fori_loop, f32 carry.
# ---------------------------------------------------------------------------
def minimal_rnn_cell_seq_kernel(h0_ref, proj_ref, wh_ref, out_ref, h_carry):
    tblk = pl.program_id(0)

    @pl.when(tblk == 0)
    def _():
        # One-time DMA of h0 (HBM, memory_space=ANY) into the f32 carry; h0 is
        # not held as a double-buffered pipelined input for the whole sequence.
        pltpu.sync_copy(h0_ref, h_carry)

    block_t = proj_ref.shape[0]
    d = h_carry.shape[-1]
    wh = wh_ref[...]                                  # (D, 2D) bf16, resident

    def step(i, h):
        # Recurrent half only: K = D matmul; s-projection + bias were hoisted.
        u = jnp.dot(h.astype(wh.dtype), wh, preferred_element_type=jnp.float32)
        u = u + proj_ref[i].astype(jnp.float32)        # (B, 2D)
        gate = jax.nn.sigmoid(u[:, :d])
        c = u[:, d:]
        cand = c * jax.nn.sigmoid(c)                   # siglu
        new_h = cand + gate * (h - cand)               # == h*gate + (1-gate)*cand
        out_ref[i] = new_h.astype(out_ref.dtype)
        return new_h

    # unroll=True: short fixed trip count -> scheduler sees the whole block and
    # can overlap EUP (sigmoid) of step i with the matmul of step i+1.
    h_carry[...] = jax.lax.fori_loop(0, block_t, step, h_carry[...], unroll=True)


def minimal_rnn_cell_seq(h0, s_seq, params, *, block_t=8, out_dtype=None,
                         proj_dtype=jnp.bfloat16, single_buffer_weights=False):
    """h0: (B, D).  s_seq: (T, B, D).  Returns all hidden states (T, B, D).

    w_h stays VMEM-resident across the whole sequence (constant index_map =>
    DMA'd once); only the precomputed bf16 s-projection streams in and h_t
    streams out.  Set out_dtype=jnp.bfloat16 if downstream accepts it (halves
    the output writeback bytes).
    """
    w_h, w_s, b = params
    T, B, D = s_seq.shape
    bt = _largest_divisor(T, block_t)
    out_dtype = h0.dtype if out_dtype is None else out_dtype

    # Hoisted data-parallel projection (bias folded in, exactly once).
    proj = precompute_input_projection(s_seq, w_s, b, bt, proj_dtype)  # (T, B, 2D)
    h0_f32 = h0.astype(jnp.float32)

    wh_spec_kwargs = {}
    if single_buffer_weights:
        # v7x (64 MiB VMEM/TC): don't double-buffer a block that never changes.
        wh_spec_kwargs["pipeline_mode"] = pl.Buffered(1)

    est = (2 * _nbytes(w_h.shape, w_h.dtype)
           + 2 * _nbytes((bt, B, 2 * D), proj_dtype)
           + 2 * _nbytes((bt, B, D), out_dtype)
           + 2 * _nbytes((B, D), jnp.float32))

    return pl.pallas_call(
        minimal_rnn_cell_seq_kernel,
        out_shape=jax.ShapeDtypeStruct((T, B, D), out_dtype),
        grid_spec=pltpu.PrefetchScalarGridSpec(
            num_scalar_prefetch=0,
            grid=(T // bt,),
            in_specs=[
                pl.BlockSpec(memory_space=pl.ANY),                    # h0 (HBM, copied once)
                pl.BlockSpec((bt, B, 2 * D), lambda t: (t, 0, 0)),    # s_proj (streamed, bf16)
                pl.BlockSpec((D, 2 * D), lambda t: (0, 0),            # w_h (resident)
                             **wh_spec_kwargs),
            ],
            out_specs=pl.BlockSpec((bt, B, D), lambda t: (t, 0, 0)),
            scratch_shapes=[pltpu.VMEM((B, D), jnp.float32)],         # h carry
        ),
        # Time blocks carry the recurrence -> sequential.  NOTE: for very large
        # D on v7x add a "parallel" output-column axis; for large B add a
        # "parallel" batch axis so both TensorCores are used.
        compiler_params=pltpu.CompilerParams(
            dimension_semantics=("arbitrary",),
            vmem_limit_bytes=_vmem_limit(est)),
    )(h0_f32, proj, w_h)


# ---------------------------------------------------------------------------
# Pure-JAX references (f32, torch-equivalent).
# ---------------------------------------------------------------------------
def _reference_step(h, s, weight, bias):
    combined = jnp.concatenate([h, s], axis=-1)
    update = combined @ weight.T + bias
    D = h.shape[-1]
    gate = jax.nn.sigmoid(update[:, :D])
    cand = update[:, D:]
    cand = cand * jax.nn.sigmoid(cand)
    return h * gate + (1.0 - gate) * cand


def _reference_seq(h0, s_seq, weight, bias):
    def step(h, s):
        nh = _reference_step(h, s, weight, bias)
        return nh, nh
    _, hs = jax.lax.scan(step, h0, s_seq)
    return hs


if __name__ == "__main__":
    B, D, T = 8, 128, 16  # batch, embed_dim, sequence length
    key = jax.random.PRNGKey(0)
    kh, ks, kw, kb = jax.random.split(key, 4)

    h = jax.random.normal(kh, (B, D), dtype=jnp.float32)
    s_seq = jax.random.normal(ks, (T, B, D), dtype=jnp.float32)

    # nn.Linear(2D, 2D) default init: U(-1/sqrt(in), 1/sqrt(in)), weight (out, in)
    bound = 1.0 / (2 * D) ** 0.5
    weight = jax.random.uniform(kw, (2 * D, 2 * D), jnp.float32, -bound, bound)
    bias = jax.random.uniform(kb, (2 * D,), jnp.float32, -bound, bound)

    # Transpose / row-split / bf16 cast exactly once (outside the step loop).
    params = prepare_params(weight, bias)

    # --- single step (MinimalRNNCell.forward semantics) ---
    out_step = jax.block_until_ready(minimal_rnn_cell(h, s_seq[0], params))
    ref_step = _reference_step(h, s_seq[0], weight, bias)
    assert out_step.shape == (B, D)
    # bf16 matmul inputs with f32 accumulate -> tolerance loosened vs pure f32.
    assert jnp.allclose(out_step, ref_step, atol=2e-2, rtol=2e-2), \
        "single-step mismatch vs reference"

    # --- single step with the output aliased onto h (donated-carry pattern) ---
    out_step2 = jax.block_until_ready(
        minimal_rnn_cell(h, s_seq[0], params, donate_h=True))
    assert jnp.allclose(out_step2, ref_step, atol=2e-2, rtol=2e-2), \
        "aliased single-step mismatch vs reference"

    # --- full sequence: hoisted projection + blocked-time recurrence ---
    out_seq = jax.block_until_ready(
        minimal_rnn_cell_seq(h, s_seq, params, block_t=4))
    ref_seq = _reference_seq(h, s_seq, weight, bias)
    assert out_seq.shape == (T, B, D)
    assert jnp.allclose(out_seq, ref_seq, atol=3e-2, rtol=3e-2), \
        "sequence mismatch vs reference"

    print("KERNEL_OK")
</pallas_src>

<mosaic_0001>
module attributes {stable_mosaic.version = 11 : i64} {
  func.func @minimal_rnn_cell_kernel(%arg0: i32, %arg1: memref<8x128xf32, #tpu.memory_space<vmem>>, %arg2: memref<8x128xf32, #tpu.memory_space<vmem>>, %arg3: memref<128x256xbf16, #tpu.memory_space<vmem>>, %arg4: memref<128x256xbf16, #tpu.memory_space<vmem>>, %arg5: memref<1x256xf32, #tpu.memory_space<vmem>>, %arg6: memref<8x128xf32, #tpu.memory_space<vmem>>) attributes {dimension_semantics = [#tpu.dimension_semantics<arbitrary>], iteration_bounds = array<i64: 1>, scalar_prefetch = 0 : i64, scratch_operands = 0 : i64, tpu.core_type = #tpu.core_type<tc>, window_params = [{pipeline_mode = #tpu.pipeline_mode<synchronous>, transform_indices = @transform_0, window_bounds = array<i64: 8, 128>}, {pipeline_mode = #tpu.pipeline_mode<synchronous>, transform_indices = @transform_1, window_bounds = array<i64: 8, 128>}, {pipeline_mode = #tpu.pipeline_mode<synchronous>, transform_indices = @transform_2, window_bounds = array<i64: 128, 256>}, {pipeline_mode = #tpu.pipeline_mode<synchronous>, transform_indices = @transform_3, window_bounds = array<i64: 128, 256>}, {pipeline_mode = #tpu.pipeline_mode<synchronous>, transform_indices = @transform_4, window_bounds = array<i64: 1, 256>}, {pipeline_mode = #tpu.pipeline_mode<synchronous>, transform_indices = @transform_5, window_bounds = array<i64: 8, 128>}]} {
    %c0 = arith.constant 0 : index
    %c0_0 = arith.constant 0 : index
    %0 = vector.load %arg1[%c0, %c0_0] : memref<8x128xf32, #tpu.memory_space<vmem>>, vector<8x128xf32>
    %1 = arith.truncf %0 : vector<8x128xf32> to vector<8x128xbf16>
    %c0_1 = arith.constant 0 : index
    %c0_2 = arith.constant 0 : index
    %2 = vector.load %arg3[%c0_1, %c0_2] : memref<128x256xbf16, #tpu.memory_space<vmem>>, vector<128x256xbf16>
    %cst = arith.constant dense<0.000000e+00> : vector<8x256xf32>
    %3 = tpu.matmul %1, %2, %cst {dimension_numbers = #tpu.dot_dimension_numbers<[1], [0], [0], [1], [0, 0, 1, 1], [], []>} : vector<8x128xbf16>, vector<128x256xbf16>, vector<8x256xf32> -> vector<8x256xf32>
    %c0_3 = arith.constant 0 : index
    %c0_4 = arith.constant 0 : index
    %4 = vector.load %arg2[%c0_3, %c0_4] : memref<8x128xf32, #tpu.memory_space<vmem>>, vector<8x128xf32>
    %5 = arith.truncf %4 : vector<8x128xf32> to vector<8x128xbf16>
    %c0_5 = arith.constant 0 : index
    %c0_6 = arith.constant 0 : index
    %6 = vector.load %arg4[%c0_5, %c0_6] : memref<128x256xbf16, #tpu.memory_space<vmem>>, vector<128x256xbf16>
    %cst_7 = arith.constant dense<0.000000e+00> : vector<8x256xf32>
    %7 = tpu.matmul %5, %6, %cst_7 {dimension_numbers = #tpu.dot_dimension_numbers<[1], [0], [0], [1], [0, 0, 1, 1], [], []>} : vector<8x128xbf16>, vector<128x256xbf16>, vector<8x256xf32> -> vector<8x256xf32>
    %8 = arith.addf %3, %7 : vector<8x256xf32>
    %c0_8 = arith.constant 0 : index
    %c0_9 = arith.constant 0 : index
    %9 = vector.load %arg5[%c0_8, %c0_9] : memref<1x256xf32, #tpu.memory_space<vmem>>, vector<1x256xf32>
    %10 = vector.broadcast %9 : vector<1x256xf32> to vector<8x256xf32>
    %11 = arith.addf %8, %10 : vector<8x256xf32>
    %12 = vector.extract_strided_slice %11 {offsets = [0, 0], sizes = [8, 128], strides = [1, 1]} : vector<8x256xf32> to vector<8x128xf32>
    %13 = arith.negf %12 : vector<8x128xf32>
    %14 = math.exp %13 : vector<8x128xf32>
    %cst_10 = arith.constant 1.000000e+00 : f32
    %15 = vector.broadcast %cst_10 : f32 to vector<8x128xf32>
    %16 = arith.addf %15, %14 : vector<8x128xf32>
    %17 = arith.divf %15, %16 : vector<8x128xf32>
    %18 = vector.extract_strided_slice %11 {offsets = [0, 128], sizes = [8, 128], strides = [1, 1]} : vector<8x256xf32> to vector<8x128xf32>
    %19 = arith.negf %18 : vector<8x128xf32>
    %20 = math.exp %19 : vector<8x128xf32>
    %cst_11 = arith.constant 1.000000e+00 : f32
    %21 = vector.broadcast %cst_11 : f32 to vector<8x128xf32>
    %22 = arith.addf %21, %20 : vector<8x128xf32>
    %23 = arith.divf %21, %22 : vector<8x128xf32>
    %24 = arith.mulf %18, %23 : vector<8x128xf32>
    %25 = arith.subf %0, %24 : vector<8x128xf32>
    %26 = arith.mulf %17, %25 : vector<8x128xf32>
    %27 = arith.addf %24, %26 : vector<8x128xf32>
    %c0_12 = arith.constant 0 : index
    %c0_13 = arith.constant 0 : index
    %28 = vector.load %arg6[%c0_12, %c0_13] : memref<8x128xf32, #tpu.memory_space<vmem>>, vector<8x128xf32>
    tpu.vector_store %arg6[%c0_12, %c0_13], %27 {strides = array<i32>} : memref<8x128xf32, #tpu.memory_space<vmem>>, vector<8x128xf32>,
    return
  }
  func.func @transform_0(%arg0: i32) -> (i32, i32) {
    %c0_i32 = arith.constant 0 : i32
    %c0_i32_0 = arith.constant 0 : i32
    %c0_i32_1 = arith.constant 0 : i32
    return %c0_i32, %c0_i32_0 : i32, i32
  }
  func.func @transform_1(%arg0: i32) -> (i32, i32) {
    %c0_i32 = arith.constant 0 : i32
    %c0_i32_0 = arith.constant 0 : i32
    %c0_i32_1 = arith.constant 0 : i32
    return %c0_i32, %c0_i32_0 : i32, i32
  }
  func.func @transform_2(%arg0: i32) -> (i32, i32) {
    %c0_i32 = arith.constant 0 : i32
    %c0_i32_0 = arith.constant 0 : i32
    %c0_i32_1 = arith.constant 0 : i32
    return %c0_i32, %c0_i32_0 : i32, i32
  }
  func.func @transform_3(%arg0: i32) -> (i32, i32) {
    %c0_i32 = arith.constant 0 : i32
    %c0_i32_0 = arith.constant 0 : i32
    %c0_i32_1 = arith.constant 0 : i32
    return %c0_i32, %c0_i32_0 : i32, i32
  }
  func.func @transform_4(%arg0: i32) -> (i32, i32) {
    %c0_i32 = arith.constant 0 : i32
    %c0_i32_0 = arith.constant 0 : i32
    %c0_i32_1 = arith.constant 0 : i32
    return %c0_i32, %c0_i32_0 : i32, i32
  }
  func.func @transform_5(%arg0: i32) -> (i32, i32) {
    %c0_i32 = arith.constant 0 : i32
    %c0_i32_0 = arith.constant 0 : i32
    %c0_i32_1 = arith.constant 0 : i32
    return %c0_i32, %c0_i32_0 : i32, i32
  }
}

</mosaic_0001>

<llo_original>
// kernel: tpu_custom_call.1
$region0: #{tpu_custom_call.1}
  #allocation0 [shape = 'u32[]', space=smem, size = 0x4, offset = 0x4, fixed_abs, tag = 'smem constant byte address 0x4 - core index']
  #allocation1 [shape = 'u32[72,128]{1,0:T(1,128)}', space=vmem, size = 0x9000, scoped, tag = 'internal scratch']
  %s0 = inlined_call_operand.hbm [shape: f32[8,128], index: 0, kind: input, shape index: {}]
  %s1 = inlined_call_operand.hbm [shape: f32[8,128], index: 1, kind: input, shape index: {}]
  %s2 = inlined_call_operand.hbm [shape: bf16[128,256], index: 2, kind: input, shape index: {}]
  %s3 = inlined_call_operand.hbm [shape: bf16[128,256], index: 3, kind: input, shape index: {}]
  %s4 = inlined_call_operand.vmem [shape: f32[1,256], index: 4, kind: input, shape index: {}]
  %s5 = inlined_call_operand.hbm [shape: f32[8,128], index: 5, kind: output, shape index: {}]
  %s6 = sld [smem:[#allocation0]]
  $region46: #{tpu_custom_call.1} parent=0
    _
  %s8 = ssub.s32 1, %s6
  %s9 = scalar_select 0, %s8, %s6
  $region1: #{tpu_custom_call.1} parent=0
    #allocation2 [shape = 'u8[4096]{0}', space=vmem, size = 0x1000, scoped, tag = 'input window, operand 0, single buffered']
    #allocation3 [shape = 's32[1]{0}', space=sflag, size = 0x4, scoped, tag = 'scoped memory for tpu_custom_call.1']
    #allocation4 [shape = 's32[1]{0}', space=sflag, size = 0x4, scoped, tag = 'scoped memory for tpu_custom_call.1']
    #allocation5 [shape = 'u8[4096]{0}', space=vmem, size = 0x1000, scoped, tag = 'input window, operand 1, single buffered']
    #allocation6 [shape = 's32[1]{0}', space=sflag, size = 0x4, scoped, tag = 'scoped memory for tpu_custom_call.1']
    #allocation7 [shape = 'u8[65536]{0}', space=vmem, size = 0x10000, scoped, tag = 'input window, operand 2, single buffered']
    #allocation8 [shape = 'u8[65536]{0}', space=vmem, size = 0x10000, scoped, tag = 'input window, operand 3, single buffered']
    #allocation9 [shape = 's32[1]{0}', space=sflag, size = 0x4, scoped, tag = 'scoped memory for tpu_custom_call.1']
    #allocation10 [shape = 'u8[4096]{0}', space=vmem, size = 0x1000, scoped, tag = 'output window, operand 0, single buffered']
    %10 = vsyncpa [#allocation3], 0
    %11 = vsyncpa [#allocation6], 0
    %12 = vsyncpa [#allocation9], 0
    %13 = vsyncpa [#allocation4], 0
    // Predicated region
    $region2: #{tpu_custom_call.1} parent=1 // pred_check
      _
    $region3: #{tpu_custom_call.1} parent=1 // pred_check_branch
      %15 = sbr.rel (0) target = $region5
    $region4: #{tpu_custom_call.1} parent=1 // pred_region
      %17 = vsyncadd [#allocation3], 0
      %s19 = sshll.u32 %s0, 4
      %s20 = int_to_ptr.hbm [resolvable:$true] %s19
      %s21 = sshll.u32 [#allocation2], 4
      %s22 = int_to_ptr.vmem [resolvable:$true] %s21
      %24 = dma.hbm_to_vmem [thread:$0]  %s20, 128, %s22, [#allocation3]
    $region5: #{tpu_custom_call.1} parent=1 // pred_fallthru
      _
    // Predicated region
    $region6: #{tpu_custom_call.1} parent=1 // pred_check
      _
    $region7: #{tpu_custom_call.1} parent=1 // pred_check_branch
      %26 = sbr.rel (0) target = $region9
    $region8: #{tpu_custom_call.1} parent=1 // pred_region
      %28 = vsyncadd [#allocation6], 0
      %s30 = sshll.u32 %s1, 4
      %s31 = int_to_ptr.hbm [resolvable:$true] %s30
      %s32 = sshll.u32 [#allocation5], 4
      %s33 = int_to_ptr.vmem [resolvable:$true] %s32
      %35 = dma.hbm_to_vmem [thread:$0]  %s31, 128, %s33, [#allocation6]
    $region9: #{tpu_custom_call.1} parent=1 // pred_fallthru
      _
    // Predicated region
    $region10: #{tpu_custom_call.1} parent=1 // pred_check
      _
    $region11: #{tpu_custom_call.1} parent=1 // pred_check_branch
      %37 = sbr.rel (0) target = $region13
    $region12: #{tpu_custom_call.1} parent=1 // pred_region
      %39 = vsyncadd [#allocation6], 0
      %s40 = sshll.u32 %s2, 4
      %s41 = int_to_ptr.hbm [resolvable:$true] %s40
      %s42 = sshll.u32 [#allocation7], 4
      %s43 = int_to_ptr.vmem [resolvable:$true] %s42
      %48 = dma.hbm_to_vmem [thread:$0]  %s41, 2048, %s43, [#allocation6], 128, 128, 8
    $region13: #{tpu_custom_call.1} parent=1 // pred_fallthru
      _
    // Predicated region
    $region14: #{tpu_custom_call.1} parent=1 // pred_check
      _
    $region15: #{tpu_custom_call.1} parent=1 // pred_check_branch
      %50 = sbr.rel (0) target = $region17
    $region16: #{tpu_custom_call.1} parent=1 // pred_region
      %52 = vsyncadd [#allocation9], 0
      %s53 = sshll.u32 %s3, 4
      %s54 = int_to_ptr.hbm [resolvable:$true] %s53
      %s55 = sshll.u32 [#allocation8], 4
      %s56 = int_to_ptr.vmem [resolvable:$true] %s55
      %61 = dma.hbm_to_vmem [thread:$0]  %s54, 2048, %s56, [#allocation9], 128, 128, 8
    $region17: #{tpu_custom_call.1} parent=1 // pred_fallthru
      _
    // Predicated region
    $region18: #{tpu_custom_call.1} parent=1 // pred_check
      _
    $region19: #{tpu_custom_call.1} parent=1 // pred_check_branch
      %63 = sbr.rel (0) target = $region21
    $region20: #{tpu_custom_call.1} parent=1 // pred_region
      _
    $region21: #{tpu_custom_call.1} parent=1 // pred_fallthru
      _
    // Predicated region
    $region22: #{tpu_custom_call.1} parent=1 // pred_check
      _
    $region23: #{tpu_custom_call.1} parent=1 // pred_check_branch
      %65 = sbr.rel (0) target = $region25
    $region24: #{tpu_custom_call.1} parent=1 // pred_region
      %67 = dma.done [#allocation3], 128
    $region25: #{tpu_custom_call.1} parent=1 // pred_fallthru
      _
    // Predicated region
    $region26: #{tpu_custom_call.1} parent=1 // pred_check
      _
    $region27: #{tpu_custom_call.1} parent=1 // pred_check_branch
      %69 = sbr.rel (0) target = $region29
    $region28: #{tpu_custom_call.1} parent=1 // pred_region
      %71 = dma.done [#allocation6], 128
    $region29: #{tpu_custom_call.1} parent=1 // pred_fallthru
      _
    // Predicated region
    $region30: #{tpu_custom_call.1} parent=1 // pred_check
      _
    $region31: #{tpu_custom_call.1} parent=1 // pred_check_branch
      %73 = sbr.rel (0) target = $region33
    $region32: #{tpu_custom_call.1} parent=1 // pred_region
      %75 = dma.done [#allocation6], 2048
    $region33: #{tpu_custom_call.1} parent=1 // pred_fallthru
      _
    // Predicated region
    $region34: #{tpu_custom_call.1} parent=1 // pred_check
      _
    $region35: #{tpu_custom_call.1} parent=1 // pred_check_branch
      %77 = sbr.rel (0) target = $region37
    $region36: #{tpu_custom_call.1} parent=1 // pred_region
      %79 = dma.done [#allocation9], 2048
    $region37: #{tpu_custom_call.1} parent=1 // pred_fallthru
      _
    %v80 = vld [vmem:[#allocation2] sm:$0xff]
    %v81 = vpack.c.bf16 %v80, %v80
    %v82 = vld [vmem:[#allocation7] sm:$0xff]
    %v83 = vld [vmem:[#allocation7 + $0x8] sm:$0xff]
    %v84 = vld [vmem:[#allocation7 + $0x10] sm:$0xff]
    %v85 = vld [vmem:[#allocation7 + $0x18] sm:$0xff]
    %v86 = vld [vmem:[#allocation7 + $0x20] sm:$0xff]
    %v87 = vld [vmem:[#allocation7 + $0x28] sm:$0xff]
    %v88 = vld [vmem:[#allocation7 + $0x30] sm:$0xff]
    %v89 = vld [vmem:[#allocation7 + $0x38] sm:$0xff]
    %v90 = vld [vmem:[#allocation7 + $0x40] sm:$0xff]
    %v91 = vld [vmem:[#allocation7 + $0x48] sm:$0xff]
    %v92 = vld [vmem:[#allocation7 + $0x50] sm:$0xff]
    %v93 = vld [vmem:[#allocation7 + $0x58] sm:$0xff]
    %v94 = vld [vmem:[#allocation7 + $0x60] sm:$0xff]
    %v95 = vld [vmem:[#allocation7 + $0x68] sm:$0xff]
    %v96 = vld [vmem:[#allocation7 + $0x70] sm:$0xff]
    %v97 = vld [vmem:[#allocation7 + $0x78] sm:$0xff]
    %v98 = vld [vmem:[#allocation5] sm:$0xff]
    %v99 = vpack.c.bf16 %v98, %v98
    %v100 = vld [vmem:[#allocation8] sm:$0xff]
    %v101 = vld [vmem:[#allocation8 + $0x8] sm:$0xff]
    %v102 = vld [vmem:[#allocation8 + $0x10] sm:$0xff]
    %v103 = vld [vmem:[#allocation8 + $0x18] sm:$0xff]
    %v104 = vld [vmem:[#allocation8 + $0x20] sm:$0xff]
    %v105 = vld [vmem:[#allocation8 + $0x28] sm:$0xff]
    %v106 = vld [vmem:[#allocation8 + $0x30] sm:$0xff]
    %v107 = vld [vmem:[#allocation8 + $0x38] sm:$0xff]
    %v108 = vld [vmem:[#allocation8 + $0x40] sm:$0xff]
    %v109 = vld [vmem:[#allocation8 + $0x48] sm:$0xff]
    %v110 = vld [vmem:[#allocation8 + $0x50] sm:$0xff]
    %v111 = vld [vmem:[#allocation8 + $0x58] sm:$0xff]
    %v112 = vld [vmem:[#allocation8 + $0x60] sm:$0xff]
    %v113 = vld [vmem:[#allocation8 + $0x68] sm:$0xff]
    %v114 = vld [vmem:[#allocation8 + $0x70] sm:$0xff]
    %v115 = vld [vmem:[#allocation8 + $0x78] sm:$0xff]
    %v132 = vunpack.c.l.b16 %v100
    %v133 = vunpack.c.h.b16 %v100
    %v134 = vunpack.c.l.b16 %v101
    %v135 = vunpack.c.h.b16 %v101
    %v136 = vunpack.c.l.b16 %v102
    %v137 = vunpack.c.h.b16 %v102
    %v138 = vunpack.c.l.b16 %v103
    %v139 = vunpack.c.h.b16 %v103
    %v140 = vunpack.c.l.b16 %v104
    %v141 = vunpack.c.h.b16 %v104
    %v142 = vunpack.c.l.b16 %v105
    %v143 = vunpack.c.h.b16 %v105
    %v144 = vunpack.c.l.b16 %v106
    %v145 = vunpack.c.h.b16 %v106
    %v146 = vunpack.c.l.b16 %v107
    %v147 = vunpack.c.h.b16 %v107
    %v148 = vunpack.c.l.b16 %v108
    %v149 = vunpack.c.h.b16 %v108
    %v150 = vunpack.c.l.b16 %v109
    %v151 = vunpack.c.h.b16 %v109
    %v152 = vunpack.c.l.b16 %v110
    %v153 = vunpack.c.h.b16 %v110
    %v154 = vunpack.c.l.b16 %v111
    %v155 = vunpack.c.h.b16 %v111
    %v156 = vunpack.c.l.b16 %v112
    %v157 = vunpack.c.h.b16 %v112
    %v158 = vunpack.c.l.b16 %v113
    %v159 = vunpack.c.h.b16 %v113
    %v160 = vunpack.c.l.b16 %v114
    %v161 = vunpack.c.h.b16 %v114
    %v162 = vunpack.c.l.b16 %v115
    %v163 = vunpack.c.h.b16 %v115
    %v164 = vpack.c.b16 %v134, %v132
    %v165 = vpack.c.b16 %v135, %v133
    %v166 = vpack.c.b16 %v138, %v136
    %v167 = vpack.c.b16 %v139, %v137
    %v168 = vpack.c.b16 %v142, %v140
    %v169 = vpack.c.b16 %v143, %v141
    %v170 = vpack.c.b16 %v146, %v144
    %v171 = vpack.c.b16 %v147, %v145
    %v172 = vpack.c.b16 %v150, %v148
    %v173 = vpack.c.b16 %v151, %v149
    %v174 = vpack.c.b16 %v154, %v152
    %v175 = vpack.c.b16 %v155, %v153
    %v176 = vpack.c.b16 %v158, %v156
    %v177 = vpack.c.b16 %v159, %v157
    %v178 = vpack.c.b16 %v162, %v160
    %v179 = vpack.c.b16 %v163, %v161
    %196 = vmatpush.bf16.msra.mxu0 %v178
    %197 = vmatpush.bf16.msra.mxu0 %v176
    %198 = vmatpush.bf16.msra.mxu0 %v174
    %199 = vmatpush.bf16.msra.mxu0 %v172
    %200 = vmatpush.bf16.msra.mxu0 %v170
    %201 = vmatpush.bf16.msra.mxu0 %v168
    %202 = vmatpush.bf16.msra.mxu0 %v166
    %203 = vmatpush.bf16.msra.mxu0 %v164
    %204 = vmatmul.bf16.gmra.mxu0 %v99
    %v205 = vpop.f32.mrf.mxu0
    %v206 = vadd.f32 0.0, %v205
    %v207 = vpop.f32.mrf.mxu0
    %208 = vdwg.mxu0
    %209 = vmatpush.bf16.msra.mxu0 %v179
    %210 = vmatpush.bf16.msra.mxu0 %v177
    %211 = vmatpush.bf16.msra.mxu0 %v175
    %212 = vmatpush.bf16.msra.mxu0 %v173
    %213 = vmatpush.bf16.msra.mxu0 %v171
    %214 = vmatpush.bf16.msra.mxu0 %v169
    %215 = vmatpush.bf16.msra.mxu0 %v167
    %216 = vmatpush.bf16.msra.mxu0 %v165
    %217 = vmatmul.bf16.gmra.mxu0 %v99
    %v218 = vpop.f32.mrf.mxu0
    %v219 = vadd.f32 0.0, %v218
    %v220 = vpop.f32.mrf.mxu0
    %221 = vdwg.mxu0
    %v238 = vunpack.c.l.b16 %v82
    %v239 = vunpack.c.h.b16 %v82
    %v240 = vunpack.c.l.b16 %v83
    %v241 = vunpack.c.h.b16 %v83
    %v242 = vunpack.c.l.b16 %v84
    %v243 = vunpack.c.h.b16 %v84
    %v244 = vunpack.c.l.b16 %v85
    %v245 = vunpack.c.h.b16 %v85
    %v246 = vunpack.c.l.b16 %v86
    %v247 = vunpack.c.h.b16 %v86
    %v248 = vunpack.c.l.b16 %v87
    %v249 = vunpack.c.h.b16 %v87
    %v250 = vunpack.c.l.b16 %v88
    %v251 = vunpack.c.h.b16 %v88
    %v252 = vunpack.c.l.b16 %v89
    %v253 = vunpack.c.h.b16 %v89
    %v254 = vunpack.c.l.b16 %v90
    %v255 = vunpack.c.h.b16 %v90
    %v256 = vunpack.c.l.b16 %v91
    %v257 = vunpack.c.h.b16 %v91
    %v258 = vunpack.c.l.b16 %v92
    %v259 = vunpack.c.h.b16 %v92
    %v260 = vunpack.c.l.b16 %v93
    %v261 = vunpack.c.h.b16 %v93
    %v262 = vunpack.c.l.b16 %v94
    %v263 = vunpack.c.h.b16 %v94
    %v264 = vunpack.c.l.b16 %v95
    %v265 = vunpack.c.h.b16 %v95
    %v266 = vunpack.c.l.b16 %v96
    %v267 = vunpack.c.h.b16 %v96
    %v268 = vunpack.c.l.b16 %v97
    %v269 = vunpack.c.h.b16 %v97
    %v270 = vpack.c.b16 %v240, %v238
    %v271 = vpack.c.b16 %v241, %v239
    %v272 = vpack.c.b16 %v244, %v242
    %v273 = vpack.c.b16 %v245, %v243
    %v274 = vpack.c.b16 %v248, %v246
    %v275 = vpack.c.b16 %v249, %v247
    %v276 = vpack.c.b16 %v252, %v250
    %v277 = vpack.c.b16 %v253, %v251
    %v278 = vpack.c.b16 %v256, %v254
    %v279 = vpack.c.b16 %v257, %v255
    %v280 = vpack.c.b16 %v260, %v258
    %v281 = vpack.c.b16 %v261, %v259
    %v282 = vpack.c.b16 %v264, %v262
    %v283 = vpack.c.b16 %v265, %v263
    %v284 = vpack.c.b16 %v268, %v266
    %v285 = vpack.c.b16 %v269, %v267
    %302 = vmatpush.bf16.msra.mxu0 %v284
    %303 = vmatpush.bf16.msra.mxu0 %v282
    %304 = vmatpush.bf16.msra.mxu0 %v280
    %305 = vmatpush.bf16.msra.mxu0 %v278
    %306 = vmatpush.bf16.msra.mxu0 %v276
    %307 = vmatpush.bf16.msra.mxu0 %v274
    %308 = vmatpush.bf16.msra.mxu0 %v272
    %309 = vmatpush.bf16.msra.mxu0 %v270
    %310 = vmatmul.bf16.gmra.mxu0 %v81
    %v311 = vpop.f32.mrf.mxu0
    %v312 = vadd.f32 %v206, %v311
    %v313 = vpop.f32.mrf.mxu0
    %314 = vdwg.mxu0
    %315 = vmatpush.bf16.msra.mxu0 %v285
    %316 = vmatpush.bf16.msra.mxu0 %v283
    %317 = vmatpush.bf16.msra.mxu0 %v281
    %318 = vmatpush.bf16.msra.mxu0 %v279
    %319 = vmatpush.bf16.msra.mxu0 %v277
    %320 = vmatpush.bf16.msra.mxu0 %v275
    %321 = vmatpush.bf16.msra.mxu0 %v273
    %322 = vmatpush.bf16.msra.mxu0 %v271
    %323 = vmatmul.bf16.gmra.mxu0 %v81
    %v324 = vpop.f32.mrf.mxu0
    %v325 = vadd.f32 %v219, %v324
    %v326 = vpop.f32.mrf.mxu0
    %327 = vdwg.mxu0
    %v328 = vld [vmem:[%s4] sm:$0x3]
    %v330 = vperm.slane %v328, 0
    %v331 = vperm.slane %v328, 1
    %v334 = vadd.f32 %v312, %v330
    %v335 = vadd.f32 %v325, %v331
    %v336 = vxor.u32 %v334, 2147483648
    %v337 = vmul.f32 %v336, 1.442695
    %v338 = vpow.pop %v337
    %v339 = vadd.f32 %v338, 1.0
    %v340 = vrcp.pop %v339
    %v341 = vmul.f32 %v339, %v340
    %v342 = vsub.f32 1.0, %v341
    %v343 = vmul.f32 %v340, %v342
    %v344 = vadd.f32 %v340, %v343
    %vm345 = vweird.f32 %v339
    %vm346 = vweird.f32 %v340
    %vm347 = vmor %vm345, %vm346
    %v348 = vsel %vm347, %v340, %v344
    %v349 = vand.u32 2147483647, %v339
    %vm350 = vcmp.eq.f32.partialorder %v349, 8.507059e+37
    %v351 = vand.u32 %v339, 2147483648
    %v352 = vor.u32 1.1754944e-38, %v351
    %v353 = vsel %vm350, %v352, %v348
    %v354 = vmul.f32 1.0, %v353
    %v355 = vxor.u32 %v335, 2147483648
    %v356 = vmul.f32 %v355, 1.442695
    %v357 = vpow.pop %v356
    %v358 = vadd.f32 %v357, 1.0
    %v359 = vrcp.pop %v358
    %v360 = vmul.f32 %v358, %v359
    %v361 = vsub.f32 1.0, %v360
    %v362 = vmul.f32 %v359, %v361
    %v363 = vadd.f32 %v359, %v362
    %vm364 = vweird.f32 %v358
    %vm365 = vweird.f32 %v359
    %vm366 = vmor %vm364, %vm365
    %v367 = vsel %vm366, %v359, %v363
    %v368 = vand.u32 2147483647, %v358
    %vm369 = vcmp.eq.f32.partialorder %v368, 8.507059e+37
    %v370 = vand.u32 %v358, 2147483648
    %v371 = vor.u32 1.1754944e-38, %v370
    %v372 = vsel %vm369, %v371, %v367
    %v373 = vmul.f32 1.0, %v372
    %v374 = vmul.f32 %v335, %v373
    %v375 = vsub.f32 %v80, %v374
    %v376 = vmul.f32 %v354, %v375
    %v377 = vadd.f32 %v374, %v376
    %378 = vst [vmem:[#allocation10] sm:$0xff] %v377
    // Predicated region
    $region38: #{tpu_custom_call.1} parent=1 // pred_check
      _
    $region39: #{tpu_custom_call.1} parent=1 // pred_check_branch
      %380 = sbr.rel (0) target = $region41
    $region40: #{tpu_custom_call.1} parent=1 // pred_region
      %382 = vsyncadd [#allocation4], 0
      %s384 = sshll.u32 [#allocation10], 4
      %s385 = int_to_ptr.vmem [resolvable:$true] %s384
      %s386 = sshll.u32 %s5, 4
      %s387 = int_to_ptr.hbm [resolvable:$true] %s386
      %389 = dma.vmem_to_hbm [thread:$0]  %s385, 128, %s387, [#allocation4]
    $region41: #{tpu_custom_call.1} parent=1 // pred_fallthru
      _
    // Predicated region
    $region42: #{tpu_custom_call.1} parent=1 // pred_check
      _
    $region43: #{tpu_custom_call.1} parent=1 // pred_check_branch
      %391 = sbr.rel (0) target = $region45
    $region44: #{tpu_custom_call.1} parent=1 // pred_region
      %393 = dma.done [#allocation4], 128
    $region45: #{tpu_custom_call.1} parent=1 // pred_fallthru
      _
    %394 = vsyncpa [#allocation3], 1
    %395 = vsyncpa [#allocation6], 1
    %396 = vsyncpa [#allocation9], 1
    %397 = vsyncpa [#allocation4], 1

</llo_original>
